<compile_context>
chip_gen: v7x
topology: tpu7x:2x2x1
jax: 0.10.0
libtpu: 0.0.40
codegen_flags: <defaults>
</compile_context>

<pallas_src>
import jax
import jax.numpy as jnp
from jax import lax
from jax.experimental import pallas as pl
from jax.experimental.pallas import tpu as pltpu

LN_EPS = 1e-5


def ffn_kernel(x_ref, w1_ref, b1_ref, w2_ref, b2_ref, g_ref, beta_ref,
               o_ref, acc_ref):
    dh = pl.program_id(1)

    @pl.when(dh == 0)
    def _():
        acc_ref[...] = jnp.zeros_like(acc_ref)

    # layer_1 chunk: relu(x @ W1[:, dh_blk] + b1[dh_blk]).  MXU operands stay
    # in their native dtype (bf16 path when inputs/weights are bf16); the
    # accumulation is f32 via preferred_element_type.
    x = x_ref[...]                                                     # (tm, D)
    h = jnp.dot(x, w1_ref[...], preferred_element_type=jnp.float32)    # (tm, tk)
    h = jnp.maximum(h + b1_ref[...].astype(jnp.float32), 0.0)

    # layer_2 partial product for this Dh chunk, accumulated in f32.
    acc_ref[...] += jnp.dot(h.astype(w2_ref.dtype), w2_ref[...],
                            preferred_element_type=jnp.float32)        # (tm, D)

    @pl.when(dh == pl.num_programs(1) - 1)
    def _():
        # Residual add + LayerNorm epilogue in f32 (v5e has no bf16 VPU/EUP).
        xf = x.astype(jnp.float32)
        y = acc_ref[...] + b2_ref[...].astype(jnp.float32) + xf
        # TODO(synk): dropout omitted (nn.Dropout; identity in eval mode).
        mean = jnp.mean(y, axis=-1, keepdims=True)
        cen = y - mean
        var = jnp.mean(cen * cen, axis=-1, keepdims=True)
        yn = cen * lax.rsqrt(var + LN_EPS)
        o_ref[...] = (yn * g_ref[...].astype(jnp.float32)
                      + beta_ref[...].astype(jnp.float32)).astype(o_ref.dtype)


def _round_up(n, m):
    return ((n + m - 1) // m) * m


def _pick_inner_tile(dh, max_tile):
    """Largest multiple-of-128 divisor of dh that is <= max_tile, else full dh."""
    if dh <= max_tile:
        return dh
    cand = max_tile - (max_tile % 128)
    while cand >= 128:
        if dh % cand == 0:
            return cand
        cand -= 128
    return dh  # no clean 128-multiple split; keep weights fully resident


def positionwise_ffn(x, w1, b1, w2, b2, gamma, beta, *, tm=512, tk_max=1024):
    """x: (B, L, D). w1: (D, Dh), b1: (Dh,), w2: (Dh, D), b2: (D,), gamma/beta: (D,)."""
    B, L, D = x.shape
    Dh = w1.shape[1]
    M = B * L

    # Row tile: as large as requested but never (much) larger than the data;
    # pad M up to a multiple of the tile instead of requiring divisibility.
    tm_eff = min(_round_up(tm, 8), _round_up(M, 8))
    M_pad = _round_up(M, tm_eff)
    # Inner-hidden tile: stream W1/W2 through VMEM in multiple-of-128 chunks.
    tk = _pick_inner_tile(Dh, tk_max)

    x2d = x.reshape(M, D)
    if M_pad != M:
        x2d = jnp.pad(x2d, ((0, M_pad - M), (0, 0)))

    b1_2d = b1.reshape(1, Dh)
    b2_2d = b2.reshape(1, D)
    g_2d = gamma.reshape(1, D)
    beta_2d = beta.reshape(1, D)

    grid = (M_pad // tm_eff, Dh // tk)

    # VMEM budget (tiles are double-buffered by default); leave headroom but
    # cap at 64 MiB so the same setting stays legal on v7x.
    in_b = jnp.dtype(x.dtype).itemsize
    w_b = jnp.dtype(w1.dtype).itemsize
    est = (4 * tm_eff * D * in_b                 # x + out tiles, double-buffered
           + 2 * (D * tk + tk * D) * w_b         # W1/W2 tiles, double-buffered
           + 2 * (tk + 3 * D) * w_b              # biases + LN params
           + tm_eff * D * 4                      # f32 accumulator scratch
           + 2 * tm_eff * tk * 4                 # f32 h intermediate
           + 4 * tm_eff * D * 4)                 # f32 epilogue temporaries
    vmem_limit = int(min(64 * 1024 * 1024, max(32 * 1024 * 1024, 2 * est)))

    flops = 4 * M_pad * D * Dh + 12 * M_pad * D
    bytes_accessed = (2 * M_pad * D * in_b                # x in + out
                      + grid[0] * 2 * D * Dh * w_b)       # weights per row tile

    out2d = pl.pallas_call(
        ffn_kernel,
        out_shape=jax.ShapeDtypeStruct((M_pad, D), x.dtype),
        grid_spec=pltpu.PrefetchScalarGridSpec(
            num_scalar_prefetch=0,
            grid=grid,
            in_specs=[
                pl.BlockSpec((tm_eff, D), lambda i, j: (i, 0)),  # x row-tile
                pl.BlockSpec((D, tk), lambda i, j: (0, j)),      # W1 chunk
                pl.BlockSpec((1, tk), lambda i, j: (0, j)),      # b1 chunk
                pl.BlockSpec((tk, D), lambda i, j: (j, 0)),      # W2 chunk
                pl.BlockSpec((1, D), lambda i, j: (0, 0)),       # b2
                pl.BlockSpec((1, D), lambda i, j: (0, 0)),       # LN gamma
                pl.BlockSpec((1, D), lambda i, j: (0, 0)),       # LN beta
            ],
            out_specs=pl.BlockSpec((tm_eff, D), lambda i, j: (i, 0)),
            scratch_shapes=[pltpu.VMEM((tm_eff, D), jnp.float32)],
        ),
        compiler_params=pltpu.CompilerParams(
            dimension_semantics=("parallel", "arbitrary"),
            vmem_limit_bytes=vmem_limit),
        cost_estimate=pl.CostEstimate(
            flops=flops, transcendentals=0, bytes_accessed=bytes_accessed),
    )(x2d, w1, b1_2d, w2, b2_2d, g_2d, beta_2d)

    if M_pad != M:
        out2d = out2d[:M]
    return out2d.reshape(B, L, D)


def reference_ffn(x, w1, b1, w2, b2, gamma, beta):
    xf = x.astype(jnp.float32)
    h = jnp.maximum(xf @ w1 + b1, 0.0)
    y = h @ w2 + b2 + xf
    mean = jnp.mean(y, axis=-1, keepdims=True)
    var = jnp.mean((y - mean) ** 2, axis=-1, keepdims=True)
    return ((y - mean) / jnp.sqrt(var + LN_EPS)) * gamma + beta


if __name__ == "__main__":
    B, L, D, Dh = 2, 8, 32, 64

    key = jax.random.PRNGKey(0)
    kx, k1, kb1, k2, kb2, kx2 = jax.random.split(key, 6)

    x = jax.random.normal(kx, (B, L, D), dtype=jnp.float32)

    # Conv1d(D, Dh, 1) weight is (Dh, D, 1) in torch; store as (D, Dh) for x @ W1.
    w1 = jax.random.normal(k1, (D, Dh), dtype=jnp.float32) * 0.05
    b1 = jax.random.normal(kb1, (Dh,), dtype=jnp.float32) * 0.05
    # Conv1d(Dh, D, 1) weight is (D, Dh, 1) in torch; store as (Dh, D) for h @ W2.
    w2 = jax.random.normal(k2, (Dh, D), dtype=jnp.float32) * 0.05
    b2 = jax.random.normal(kb2, (D,), dtype=jnp.float32) * 0.05
    # LayerNorm params (torch default init: gamma=1, beta=0).
    gamma = jnp.ones((D,), dtype=jnp.float32)
    beta = jnp.zeros((D,), dtype=jnp.float32)

    out = positionwise_ffn(x, w1, b1, w2, b2, gamma, beta)
    out = jax.block_until_ready(out)
    ref = reference_ffn(x, w1, b1, w2, b2, gamma, beta)
    assert out.shape == (B, L, D)
    assert jnp.allclose(out, ref, atol=1e-5, rtol=1e-5)

    # Exercise the M-padding path (B*L not a multiple of 8 / the row tile).
    x_odd = jax.random.normal(kx2, (3, 5, D), dtype=jnp.float32)
    out_odd = jax.block_until_ready(
        positionwise_ffn(x_odd, w1, b1, w2, b2, gamma, beta))
    ref_odd = reference_ffn(x_odd, w1, b1, w2, b2, gamma, beta)
    assert out_odd.shape == (3, 5, D)
    assert jnp.allclose(out_odd, ref_odd, atol=1e-5, rtol=1e-5)

    print("KERNEL_OK")
</pallas_src>

<mosaic_0001>
module attributes {stable_mosaic.version = 11 : i64} {
  func.func @ffn_kernel(%arg0: i32, %arg1: i32, %arg2: memref<16x32xf32, #tpu.memory_space<vmem>>, %arg3: memref<32x64xf32, #tpu.memory_space<vmem>>, %arg4: memref<1x64xf32, #tpu.memory_space<vmem>>, %arg5: memref<64x32xf32, #tpu.memory_space<vmem>>, %arg6: memref<1x32xf32, #tpu.memory_space<vmem>>, %arg7: memref<1x32xf32, #tpu.memory_space<vmem>>, %arg8: memref<1x32xf32, #tpu.memory_space<vmem>>, %arg9: memref<16x32xf32, #tpu.memory_space<vmem>>, %arg10: memref<16x32xf32, #tpu.memory_space<vmem>>) attributes {dimension_semantics = [#tpu.dimension_semantics<parallel>, #tpu.dimension_semantics<arbitrary>], iteration_bounds = array<i64: 1, 1>, scalar_prefetch = 0 : i64, scratch_operands = 1 : i64, tpu.core_type = #tpu.core_type<tc>, window_params = [{transform_indices = @transform_0, window_bounds = array<i64: 16, 32>}, {transform_indices = @transform_1, window_bounds = array<i64: 32, 64>}, {transform_indices = @transform_2, window_bounds = array<i64: 1, 64>}, {transform_indices = @transform_3, window_bounds = array<i64: 64, 32>}, {pipeline_mode = #tpu.pipeline_mode<synchronous>, transform_indices = @transform_4, window_bounds = array<i64: 1, 32>}, {pipeline_mode = #tpu.pipeline_mode<synchronous>, transform_indices = @transform_5, window_bounds = array<i64: 1, 32>}, {pipeline_mode = #tpu.pipeline_mode<synchronous>, transform_indices = @transform_6, window_bounds = array<i64: 1, 32>}, {transform_indices = @transform_7, window_bounds = array<i64: 16, 32>}]} {
    %c0_i32 = arith.constant 0 : i32
    %0 = arith.cmpi eq, %arg1, %c0_i32 : i32
    %1 = arith.extui %0 : i1 to i32
    %c0_i32_0 = arith.constant 0 : i32
    %2 = arith.cmpi ne, %1, %c0_i32_0 : i32
    scf.if %2 {
      %cst_16 = arith.constant 0.000000e+00 : f32
      %19 = vector.broadcast %cst_16 : f32 to vector<16x32xf32>
      %c0_17 = arith.constant 0 : index
      %c0_18 = arith.constant 0 : index
      %20 = vector.load %arg10[%c0_17, %c0_18] : memref<16x32xf32, #tpu.memory_space<vmem>>, vector<16x32xf32>
      tpu.vector_store %arg10[%c0_17, %c0_18], %19 {strides = array<i32>} : memref<16x32xf32, #tpu.memory_space<vmem>>, vector<16x32xf32>,
    } else {
    }
    %c0 = arith.constant 0 : index
    %c0_1 = arith.constant 0 : index
    %3 = vector.load %arg2[%c0, %c0_1] : memref<16x32xf32, #tpu.memory_space<vmem>>, vector<16x32xf32>
    %c0_2 = arith.constant 0 : index
    %c0_3 = arith.constant 0 : index
    %4 = vector.load %arg3[%c0_2, %c0_3] : memref<32x64xf32, #tpu.memory_space<vmem>>, vector<32x64xf32>
    %cst = arith.constant dense<0.000000e+00> : vector<16x64xf32>
    %5 = tpu.matmul %3, %4, %cst {dimension_numbers = #tpu.dot_dimension_numbers<[1], [0], [0], [1], [0, 0, 1, 1], [], []>} : vector<16x32xf32>, vector<32x64xf32>, vector<16x64xf32> -> vector<16x64xf32>
    %c0_4 = arith.constant 0 : index
    %c0_5 = arith.constant 0 : index
    %6 = vector.load %arg4[%c0_4, %c0_5] : memref<1x64xf32, #tpu.memory_space<vmem>>, vector<1x64xf32>
    %7 = vector.broadcast %6 : vector<1x64xf32> to vector<16x64xf32>
    %8 = arith.addf %5, %7 : vector<16x64xf32>
    %cst_6 = arith.constant 0.000000e+00 : f32
    %9 = vector.broadcast %cst_6 : f32 to vector<16x64xf32>
    %10 = arith.maximumf %8, %9 : vector<16x64xf32>
    %c0_7 = arith.constant 0 : index
    %c0_8 = arith.constant 0 : index
    %11 = vector.load %arg10[%c0_7, %c0_8] : memref<16x32xf32, #tpu.memory_space<vmem>>, vector<16x32xf32>
    %c0_9 = arith.constant 0 : index
    %c0_10 = arith.constant 0 : index
    %12 = vector.load %arg5[%c0_9, %c0_10] : memref<64x32xf32, #tpu.memory_space<vmem>>, vector<64x32xf32>
    %cst_11 = arith.constant dense<0.000000e+00> : vector<16x32xf32>
    %13 = tpu.matmul %10, %12, %cst_11 {dimension_numbers = #tpu.dot_dimension_numbers<[1], [0], [0], [1], [0, 0, 1, 1], [], []>} : vector<16x64xf32>, vector<64x32xf32>, vector<16x32xf32> -> vector<16x32xf32>
    %14 = arith.addf %11, %13 : vector<16x32xf32>
    %c0_12 = arith.constant 0 : index
    %c0_13 = arith.constant 0 : index
    %15 = vector.load %arg10[%c0_12, %c0_13] : memref<16x32xf32, #tpu.memory_space<vmem>>, vector<16x32xf32>
    tpu.vector_store %arg10[%c0_12, %c0_13], %14 {strides = array<i32>} : memref<16x32xf32, #tpu.memory_space<vmem>>, vector<16x32xf32>,
    %c0_i32_14 = arith.constant 0 : i32
    %16 = arith.cmpi eq, %arg1, %c0_i32_14 : i32
    %17 = arith.extui %16 : i1 to i32
    %c0_i32_15 = arith.constant 0 : i32
    %18 = arith.cmpi ne, %17, %c0_i32_15 : i32
    scf.if %18 {
      %c0_16 = arith.constant 0 : index
      %c0_17 = arith.constant 0 : index
      %19 = vector.load %arg10[%c0_16, %c0_17] : memref<16x32xf32, #tpu.memory_space<vmem>>, vector<16x32xf32>
      %c0_18 = arith.constant 0 : index
      %c0_19 = arith.constant 0 : index
      %20 = vector.load %arg6[%c0_18, %c0_19] : memref<1x32xf32, #tpu.memory_space<vmem>>, vector<1x32xf32>
      %21 = vector.broadcast %20 : vector<1x32xf32> to vector<16x32xf32>
      %22 = arith.addf %19, %21 : vector<16x32xf32>
      %23 = arith.addf %22, %3 : vector<16x32xf32>
      %cst_20 = arith.constant dense<0.000000e+00> : vector<16xf32>
      %24 = vector.multi_reduction <add>, %23, %cst_20 [1] : vector<16x32xf32> to vector<16xf32>
      %25 = vector.shape_cast %24 : vector<16xf32> to vector<16x1xf32>
      %cst_21 = arith.constant 3.200000e+01 : f32
      %26 = vector.broadcast %cst_21 : f32 to vector<16x1xf32>
      %27 = arith.divf %25, %26 : vector<16x1xf32>
      %28 = vector.broadcast %27 : vector<16x1xf32> to vector<16x32xf32>
      %29 = arith.subf %23, %28 : vector<16x32xf32>
      %30 = arith.mulf %29, %29 : vector<16x32xf32>
      %cst_22 = arith.constant dense<0.000000e+00> : vector<16xf32>
      %31 = vector.multi_reduction <add>, %30, %cst_22 [1] : vector<16x32xf32> to vector<16xf32>
      %32 = vector.shape_cast %31 : vector<16xf32> to vector<16x1xf32>
      %cst_23 = arith.constant 3.200000e+01 : f32
      %33 = vector.broadcast %cst_23 : f32 to vector<16x1xf32>
      %34 = arith.divf %32, %33 : vector<16x1xf32>
      %cst_24 = arith.constant 9.99999974E-6 : f32
      %35 = vector.broadcast %cst_24 : f32 to vector<16x1xf32>
      %36 = arith.addf %34, %35 : vector<16x1xf32>
      %37 = math.rsqrt %36 : vector<16x1xf32>
      %38 = vector.broadcast %37 : vector<16x1xf32> to vector<16x32xf32>
      %39 = arith.mulf %29, %38 : vector<16x32xf32>
      %c0_25 = arith.constant 0 : index
      %c0_26 = arith.constant 0 : index
      %40 = vector.load %arg7[%c0_25, %c0_26] : memref<1x32xf32, #tpu.memory_space<vmem>>, vector<1x32xf32>
      %41 = vector.broadcast %40 : vector<1x32xf32> to vector<16x32xf32>
      %42 = arith.mulf %39, %41 : vector<16x32xf32>
      %c0_27 = arith.constant 0 : index
      %c0_28 = arith.constant 0 : index
      %43 = vector.load %arg8[%c0_27, %c0_28] : memref<1x32xf32, #tpu.memory_space<vmem>>, vector<1x32xf32>
      %44 = vector.broadcast %43 : vector<1x32xf32> to vector<16x32xf32>
      %45 = arith.addf %42, %44 : vector<16x32xf32>
      %c0_29 = arith.constant 0 : index
      %c0_30 = arith.constant 0 : index
      %46 = vector.load %arg9[%c0_29, %c0_30] : memref<16x32xf32, #tpu.memory_space<vmem>>, vector<16x32xf32>
      tpu.vector_store %arg9[%c0_29, %c0_30], %45 {strides = array<i32>} : memref<16x32xf32, #tpu.memory_space<vmem>>, vector<16x32xf32>,
    } else {
    }
    return
  }
  func.func @transform_0(%arg0: i32, %arg1: i32) -> (i32, i32) {
    %c0_i32 = arith.constant 0 : i32
    %c0_i32_0 = arith.constant 0 : i32
    return %arg0, %c0_i32 : i32, i32
  }
  func.func @transform_1(%arg0: i32, %arg1: i32) -> (i32, i32) {
    %c0_i32 = arith.constant 0 : i32
    %c0_i32_0 = arith.constant 0 : i32
    return %c0_i32, %arg1 : i32, i32
  }
  func.func @transform_2(%arg0: i32, %arg1: i32) -> (i32, i32) {
    %c0_i32 = arith.constant 0 : i32
    %c0_i32_0 = arith.constant 0 : i32
    return %c0_i32, %arg1 : i32, i32
  }
  func.func @transform_3(%arg0: i32, %arg1: i32) -> (i32, i32) {
    %c0_i32 = arith.constant 0 : i32
    %c0_i32_0 = arith.constant 0 : i32
    return %arg1, %c0_i32 : i32, i32
  }
  func.func @transform_4(%arg0: i32, %arg1: i32) -> (i32, i32) {
    %c0_i32 = arith.constant 0 : i32
    %c0_i32_0 = arith.constant 0 : i32
    %c0_i32_1 = arith.constant 0 : i32
    return %c0_i32, %c0_i32_0 : i32, i32
  }
  func.func @transform_5(%arg0: i32, %arg1: i32) -> (i32, i32) {
    %c0_i32 = arith.constant 0 : i32
    %c0_i32_0 = arith.constant 0 : i32
    %c0_i32_1 = arith.constant 0 : i32
    return %c0_i32, %c0_i32_0 : i32, i32
  }
  func.func @transform_6(%arg0: i32, %arg1: i32) -> (i32, i32) {
    %c0_i32 = arith.constant 0 : i32
    %c0_i32_0 = arith.constant 0 : i32
    %c0_i32_1 = arith.constant 0 : i32
    return %c0_i32, %c0_i32_0 : i32, i32
  }
  func.func @transform_7(%arg0: i32, %arg1: i32) -> (i32, i32) {
    %c0_i32 = arith.constant 0 : i32
    %c0_i32_0 = arith.constant 0 : i32
    return %arg0, %c0_i32 : i32, i32
  }
}

</mosaic_0001>

<llo_original>
// kernel: tpu_custom_call.1
$region0: #{tpu_custom_call.1}
  #allocation0 [shape = 'u32[]', space=smem, size = 0x4, offset = 0x4, fixed_abs, tag = 'smem constant byte address 0x4 - core index']
  #allocation1 [shape = 'u32[144,128]{1,0:T(1,128)}', space=vmem, size = 0x12000, scoped, tag = 'internal scratch']
  #allocation2 [shape = 'f32[16,32]{1,0:T(8,128)}', space=vmem, size = 0x2000, scoped, tag = 'scratch operand']
  %s0 = inlined_call_operand.vmem [shape: f32[16,32], index: 0, kind: input, shape index: {}]
  %s1 = inlined_call_operand.vmem [shape: f32[32,64], index: 1, kind: input, shape index: {}]
  %s2 = inlined_call_operand.vmem [shape: f32[1,64], index: 2, kind: input, shape index: {}]
  %s3 = inlined_call_operand.vmem [shape: f32[64,32], index: 3, kind: input, shape index: {}]
  %s4 = inlined_call_operand.vmem [shape: f32[1,32], index: 4, kind: input, shape index: {}]
  %s5 = inlined_call_operand.vmem [shape: f32[1,32], index: 5, kind: input, shape index: {}]
  %s6 = inlined_call_operand.vmem [shape: f32[1,32], index: 6, kind: input, shape index: {}]
  %s7 = inlined_call_operand.hbm [shape: f32[16,32], index: 7, kind: output, shape index: {}]
  %s8 = sld [smem:[#allocation0]]
  $region46: #{tpu_custom_call.1} parent=0
    _
  %s10 = ssub.s32 1, %s8
  %s11 = scalar_select 0, %s10, %s8
  $region1: #{tpu_custom_call.1} parent=0
    #allocation3 [shape = 'u8[8192]{0}', space=vmem, size = 0x2000, scoped, tag = 'output window, operand 0, single buffered']
    #allocation4 [shape = 's32[1]{0}', space=sflag, size = 0x4, scoped, tag = 'scoped memory for tpu_custom_call.1']
    %12 = vsyncpa [#allocation4], 0
    // Predicated region
    $region2: #{tpu_custom_call.1} parent=1 // pred_check
      _
    $region3: #{tpu_custom_call.1} parent=1 // pred_check_branch
      %14 = sbr.rel (0) target = $region5
    $region4: #{tpu_custom_call.1} parent=1 // pred_region
      _
    $region5: #{tpu_custom_call.1} parent=1 // pred_fallthru
      _
    // Predicated region
    $region6: #{tpu_custom_call.1} parent=1 // pred_check
      _
    $region7: #{tpu_custom_call.1} parent=1 // pred_check_branch
      %16 = sbr.rel (0) target = $region9
    $region8: #{tpu_custom_call.1} parent=1 // pred_region
      _
    $region9: #{tpu_custom_call.1} parent=1 // pred_fallthru
      _
    // Predicated region
    $region10: #{tpu_custom_call.1} parent=1 // pred_check
      _
    $region11: #{tpu_custom_call.1} parent=1 // pred_check_branch
      %18 = sbr.rel (0) target = $region13
    $region12: #{tpu_custom_call.1} parent=1 // pred_region
      _
    $region13: #{tpu_custom_call.1} parent=1 // pred_fallthru
      _
    // Predicated region
    $region14: #{tpu_custom_call.1} parent=1 // pred_check
      _
    $region15: #{tpu_custom_call.1} parent=1 // pred_check_branch
      %20 = sbr.rel (0) target = $region17
    $region16: #{tpu_custom_call.1} parent=1 // pred_region
      _
    $region17: #{tpu_custom_call.1} parent=1 // pred_fallthru
      _
    // Predicated region
    $region18: #{tpu_custom_call.1} parent=1 // pred_check
      _
    $region19: #{tpu_custom_call.1} parent=1 // pred_check_branch
      %22 = sbr.rel (0) target = $region21
    $region20: #{tpu_custom_call.1} parent=1 // pred_region
      _
    $region21: #{tpu_custom_call.1} parent=1 // pred_fallthru
      _
    // Predicated region
    $region22: #{tpu_custom_call.1} parent=1 // pred_check
      _
    $region23: #{tpu_custom_call.1} parent=1 // pred_check_branch
      %24 = sbr.rel (0) target = $region25
    $region24: #{tpu_custom_call.1} parent=1 // pred_region
      _
    $region25: #{tpu_custom_call.1} parent=1 // pred_fallthru
      _
    // Predicated region
    $region26: #{tpu_custom_call.1} parent=1 // pred_check
      _
    $region27: #{tpu_custom_call.1} parent=1 // pred_check_branch
      %26 = sbr.rel (0) target = $region29
    $region28: #{tpu_custom_call.1} parent=1 // pred_region
      _
    $region29: #{tpu_custom_call.1} parent=1 // pred_fallthru
      _
    %p27 = scmp.eq.s32.totalorder 0, 0
    // Predicated region
    $region30: #{tpu_custom_call.1} parent=1 // pred_check
      %p28 = pneg %p27
    $region31: #{tpu_custom_call.1} parent=1 // pred_check_branch
      %30 = sbr.rel (%p28) target = $region33
    $region32: #{tpu_custom_call.1} parent=1 // pred_region
      %vm31 = vcmask 261120
      %32 = vst.msk [vmem:[#allocation2] sm:$0xff] %vm31, 0.0
      %33 = vst.msk [vmem:[#allocation2 + $0x8] sm:$0xff] %vm31, 0.0
    $region33: #{tpu_custom_call.1} parent=1 // pred_fallthru
      _
    %v34 = vld [vmem:[%s0] sm:$0xff]
    %v35 = vld [vmem:[%s0 + $0x8] sm:$0xff]
    %v36 = vld [vmem:[%s1] sm:$0xff]
    %v37 = vld [vmem:[%s1 + $0x8] sm:$0xff]
    %v38 = vld [vmem:[%s1 + $0x10] sm:$0xff]
    %v39 = vld [vmem:[%s1 + $0x18] sm:$0xff]
    %v40 = vld [vmem:[%s2] sm:$0x1]
    %v42 = vlaneseq
    %v43 = vshrl.u32 %v42, 7
    %v44 = vsub.s32 0, %v43
    %v45 = vrot.slane %v40, %v44
    %vm47 = vcmask 261120
    %v49 = vsel %vm47, %v34, 0
    %v52 = vsel %vm47, %v35, 0
    %54 = vmatprep.subr.mxu0 0.0
    %55 = vmatpush1.msra.mxu0 %v36
    %56 = vmatprep.subr.mxu0 0.0
    %57 = vmatpush1.msra.mxu0 %v37
    %58 = vmatprep.subr.mxu0 0.0
    %59 = vmatpush1.msra.mxu0 %v38
    %60 = vmatprep.subr.mxu0 0.0
    %61 = vmatpush1.msra.mxu0 %v39
    %62 = vmatprep.subr.mxu0 0.0
    %63 = vmatpush1.msra.mxu0 0.0
    %64 = vmatprep.subr.mxu0 0.0
    %65 = vmatpush1.msra.mxu0 0.0
    %66 = vmatprep.subr.mxu0 0.0
    %67 = vmatpush1.msra.mxu0 0.0
    %68 = vmatprep.subr.mxu0 0.0
    %69 = vmatpush1.msra.mxu0 0.0
    %70 = vmatprep.subr.mxu0 0.0
    %71 = vmatpush1.msra.mxu0 0.0
    %72 = vmatprep.subr.mxu0 0.0
    %73 = vmatpush1.msra.mxu0 0.0
    %74 = vmatprep.subr.mxu0 0.0
    %75 = vmatpush1.msra.mxu0 0.0
    %76 = vmatprep.subr.mxu0 0.0
    %77 = vmatpush1.msra.mxu0 0.0
    %78 = vmatprep.subr.mxu0 0.0
    %79 = vmatpush1.msra.mxu0 0.0
    %80 = vmatprep.subr.mxu0 0.0
    %81 = vmatpush1.msra.mxu0 0.0
    %82 = vmatprep.subr.mxu0 0.0
    %83 = vmatpush1.msra.mxu0 0.0
    %84 = vmatprep.subr.mxu0 0.0
    %85 = vmatpush1.msra.mxu0 0.0
    %86 = vmatprep.subr.mxu0 0.0
    %87 = vmatpush1.msra.mxu0 0.0
    %88 = vmatprep.subr.mxu0 0.0
    %89 = vmatpush1.msra.mxu0 0.0
    %90 = vmatprep.subr.mxu0 0.0
    %91 = vmatpush1.msra.mxu0 0.0
    %92 = vmatprep.subr.mxu0 0.0
    %93 = vmatpush1.msra.mxu0 0.0
    %94 = vmatprep.subr.mxu0 0.0
    %95 = vmatpush1.msra.mxu0 0.0
    %96 = vmatprep.subr.mxu0 0.0
    %97 = vmatpush1.msra.mxu0 0.0
    %98 = vmatprep.subr.mxu0 0.0
    %99 = vmatpush1.msra.mxu0 0.0
    %100 = vmatprep.subr.mxu0 0.0
    %101 = vmatpush1.msra.mxu0 0.0
    %102 = vmatprep.subr.mxu0 0.0
    %103 = vmatpush1.msra.mxu0 0.0
    %104 = vmatprep.subr.mxu0 0.0
    %105 = vmatpush1.msra.mxu0 0.0
    %106 = vmatprep.subr.mxu0 0.0
    %107 = vmatpush1.msra.mxu0 0.0
    %108 = vmatprep.subr.mxu0 0.0
    %109 = vmatpush1.msra.mxu0 0.0
    %110 = vmatprep.subr.mxu0 0.0
    %111 = vmatpush1.msra.mxu0 0.0
    %112 = vmatprep.subr.mxu0 0.0
    %113 = vmatpush1.msra.mxu0 0.0
    %114 = vmatprep.subr.mxu0 0.0
    %115 = vmatpush1.msra.mxu0 0.0
    %116 = vmatprep.subr.mxu0 0.0
    %117 = vmatpush1.msra.mxu0 0.0
    %118 = vmatprep.mubr.f32.mxu0 0.0
    %119 = vmatmul.mubr.f32.gmra.mrb[0].mxu0 %v49
    %v120 = vpop.f32.mrb[0].mxu0
    %v121 = vadd.f32 %v45, %v120
    %v122 = vpop.f32.mrb[0].mxu0
    %123 = vmatprep.mubr.f32.mxu0 0.0
    %124 = vmatmul.mubr.f32.gmra.mrb[0].mxu0 %v52
    %v125 = vpop.f32.mrb[0].mxu0
    %v126 = vadd.f32 %v45, %v125
    %v127 = vpop.f32.mrb[0].mxu0
    %128 = vdwg.mxu0
    %v129 = vmax.f32 %v121, 0.0
    %v130 = vmax.f32 %v126, 0.0
    %v131 = vld [vmem:[#allocation2] sm:$0xff]
    %v132 = vld [vmem:[#allocation2 + $0x8] sm:$0xff]
    %v133 = vld [vmem:[%s3] sm:$0xff]
    %v134 = vld [vmem:[%s3 + $0x8] sm:$0xff]
    %v135 = vld [vmem:[%s3 + $0x10] sm:$0xff]
    %v136 = vld [vmem:[%s3 + $0x18] sm:$0xff]
    %v137 = vld [vmem:[%s3 + $0x20] sm:$0xff]
    %v138 = vld [vmem:[%s3 + $0x28] sm:$0xff]
    %v139 = vld [vmem:[%s3 + $0x30] sm:$0xff]
    %v140 = vld [vmem:[%s3 + $0x38] sm:$0xff]
    %vm141 = vcmask 523264
    %v143 = vsel %vm141, %v129, 0
    %v146 = vsel %vm141, %v130, 0
    %148 = vmatprep.subr.mxu0 0.0
    %149 = vmatpush1.msra.mxu0 %v133
    %150 = vmatprep.subr.mxu0 0.0
    %151 = vmatpush1.msra.mxu0 %v134
    %152 = vmatprep.subr.mxu0 0.0
    %153 = vmatpush1.msra.mxu0 %v135
    %154 = vmatprep.subr.mxu0 0.0
    %155 = vmatpush1.msra.mxu0 %v136
    %156 = vmatprep.subr.mxu0 0.0
    %157 = vmatpush1.msra.mxu0 %v137
    %158 = vmatprep.subr.mxu0 0.0
    %159 = vmatpush1.msra.mxu0 %v138
    %160 = vmatprep.subr.mxu0 0.0
    %161 = vmatpush1.msra.mxu0 %v139
    %162 = vmatprep.subr.mxu0 0.0
    %163 = vmatpush1.msra.mxu0 %v140
    %164 = vmatprep.subr.mxu0 0.0
    %165 = vmatpush1.msra.mxu0 0.0
    %166 = vmatprep.subr.mxu0 0.0
    %167 = vmatpush1.msra.mxu0 0.0
    %168 = vmatprep.subr.mxu0 0.0
    %169 = vmatpush1.msra.mxu0 0.0
    %170 = vmatprep.subr.mxu0 0.0
    %171 = vmatpush1.msra.mxu0 0.0
    %172 = vmatprep.subr.mxu0 0.0
    %173 = vmatpush1.msra.mxu0 0.0
    %174 = vmatprep.subr.mxu0 0.0
    %175 = vmatpush1.msra.mxu0 0.0
    %176 = vmatprep.subr.mxu0 0.0
    %177 = vmatpush1.msra.mxu0 0.0
    %178 = vmatprep.subr.mxu0 0.0
    %179 = vmatpush1.msra.mxu0 0.0
    %180 = vmatprep.subr.mxu0 0.0
    %181 = vmatpush1.msra.mxu0 0.0
    %182 = vmatprep.subr.mxu0 0.0
    %183 = vmatpush1.msra.mxu0 0.0
    %184 = vmatprep.subr.mxu0 0.0
    %185 = vmatpush1.msra.mxu0 0.0
    %186 = vmatprep.subr.mxu0 0.0
    %187 = vmatpush1.msra.mxu0 0.0
    %188 = vmatprep.subr.mxu0 0.0
    %189 = vmatpush1.msra.mxu0 0.0
    %190 = vmatprep.subr.mxu0 0.0
    %191 = vmatpush1.msra.mxu0 0.0
    %192 = vmatprep.subr.mxu0 0.0
    %193 = vmatpush1.msra.mxu0 0.0
    %194 = vmatprep.subr.mxu0 0.0
    %195 = vmatpush1.msra.mxu0 0.0
    %196 = vmatprep.subr.mxu0 0.0
    %197 = vmatpush1.msra.mxu0 0.0
    %198 = vmatprep.subr.mxu0 0.0
    %199 = vmatpush1.msra.mxu0 0.0
    %200 = vmatprep.subr.mxu0 0.0
    %201 = vmatpush1.msra.mxu0 0.0
    %202 = vmatprep.subr.mxu0 0.0
    %203 = vmatpush1.msra.mxu0 0.0
    %204 = vmatprep.subr.mxu0 0.0
    %205 = vmatpush1.msra.mxu0 0.0
    %206 = vmatprep.subr.mxu0 0.0
    %207 = vmatpush1.msra.mxu0 0.0
    %208 = vmatprep.subr.mxu0 0.0
    %209 = vmatpush1.msra.mxu0 0.0
    %210 = vmatprep.subr.mxu0 0.0
    %211 = vmatpush1.msra.mxu0 0.0
    %212 = vmatprep.mubr.f32.mxu0 0.0
    %213 = vmatmul.mubr.f32.gmra.mrb[0].mxu0 %v143
    %v214 = vpop.f32.mrb[0].mxu0
    %v215 = vadd.f32 0.0, %v214
    %v216 = vpop.f32.mrb[0].mxu0
    %217 = vmatprep.mubr.f32.mxu0 0.0
    %218 = vmatmul.mubr.f32.gmra.mrb[0].mxu0 %v146
    %v219 = vpop.f32.mrb[0].mxu0
    %v220 = vadd.f32 0.0, %v219
    %v221 = vpop.f32.mrb[0].mxu0
    %222 = vdwg.mxu0
    %v223 = vadd.f32 %v131, %v215
    %v224 = vadd.f32 %v132, %v220
    %225 = vst.msk [vmem:[#allocation2] sm:$0xff] %vm47, %v223
    %226 = vst.msk [vmem:[#allocation2 + $0x8] sm:$0xff] %vm47, %v224
    // Predicated region
    $region34: #{tpu_custom_call.1} parent=1 // pred_check
      %p227 = pneg %p27
    $region35: #{tpu_custom_call.1} parent=1 // pred_check_branch
      %229 = sbr.rel (%p227) target = $region37
    $region36: #{tpu_custom_call.1} parent=1 // pred_region
      %v230 = vld [vmem:[#allocation2] sm:$0xff]
      %v231 = vld [vmem:[#allocation2 + $0x8] sm:$0xff]
      %v232 = vld [vmem:[%s4] sm:$0x1]
      %v234 = vlaneseq
      %v235 = vshrl.u32 %v234, 7
      %v236 = vsub.s32 0, %v235
      %v237 = vrot.slane %v232, %v236
      %v239 = vadd.f32 %v230, %v237
      %v240 = vadd.f32 %v231, %v237
      %v241 = vadd.f32 %v239, %v34
      %v242 = vadd.f32 %v240, %v35
      %v243 = vsel %vm47, %v241, 0.0
      %244 = vadd.xlane.f32.xlu0 %v243
      %v245 = vpop.xlane.xlu0 %244
      %v246 = vsel %vm47, %v242, 0.0
      %247 = vadd.xlane.f32.xlu0 %v246
      %v248 = vpop.xlane.xlu0 %247
      %v249 = vrcp.pop 32.0
      %v250 = vmul.f32 %v245, %v249
      %v251 = vmul.f32 %v248, %v249
      %v252 = vsub.f32 %v241, %v250
      %v253 = vsub.f32 %v242, %v251
      %v254 = vmul.f32 %v252, %v252
      %v255 = vmul.f32 %v253, %v253
      %v256 = vsel %vm47, %v254, 0.0
      %257 = vadd.xlane.f32.xlu0 %v256
      %v258 = vpop.xlane.xlu0 %257
      %v259 = vsel %vm47, %v255, 0.0
      %260 = vadd.xlane.f32.xlu0 %v259
      %v261 = vpop.xlane.xlu0 %260
      %v262 = vmul.f32 %v258, %v249
      %v263 = vmul.f32 %v261, %v249
      %v264 = vadd.f32 %v262, 1e-05
      %v265 = vadd.f32 %v263, 1e-05
      %v266 = vrsqrt.pop %v264
      %v267 = vrsqrt.pop %v265
      %v268 = vmul.f32 %v252, %v266
      %v269 = vmul.f32 %v253, %v267
      %v270 = vld [vmem:[%s5] sm:$0x1]
      %v272 = vlaneseq
      %v273 = vshrl.u32 %v272, 7
      %v274 = vsub.s32 0, %v273
      %v275 = vrot.slane %v270, %v274
      %v277 = vmul.f32 %v268, %v275
      %v278 = vmul.f32 %v269, %v275
      %v279 = vld [vmem:[%s6] sm:$0x1]
      %v281 = vlaneseq
      %v282 = vshrl.u32 %v281, 7
      %v283 = vsub.s32 0, %v282
      %v284 = vrot.slane %v279, %v283
      %v286 = vadd.f32 %v277, %v284
      %v287 = vadd.f32 %v278, %v284
      %288 = vst.msk [vmem:[#allocation3] sm:$0xff] %vm47, %v286
      %289 = vst.msk [vmem:[#allocation3 + $0x8] sm:$0xff] %vm47, %v287
    $region37: #{tpu_custom_call.1} parent=1 // pred_fallthru
      _
    // Predicated region
    $region38: #{tpu_custom_call.1} parent=1 // pred_check
      _
    $region39: #{tpu_custom_call.1} parent=1 // pred_check_branch
      %291 = sbr.rel (0) target = $region41
    $region40: #{tpu_custom_call.1} parent=1 // pred_region
      %s293 = ssub.s32 256, 256
      %294 = vsyncadd [#allocation4], %s293
      %s295 = sshll.u32 [#allocation3], 4
      %s296 = int_to_ptr.vmem [resolvable:$true] %s295
      %301 = dma.vmem_to_hbm [thread:$0]  %s296, 256, %s7, [#allocation4], 128, 128, 8
    $region41: #{tpu_custom_call.1} parent=1 // pred_fallthru
      _
    // Predicated region
    $region42: #{tpu_custom_call.1} parent=1 // pred_check
      _
    $region43: #{tpu_custom_call.1} parent=1 // pred_check_branch
      %303 = sbr.rel (0) target = $region45
    $region44: #{tpu_custom_call.1} parent=1 // pred_region
      %304 = dma.done [#allocation4], 256
    $region45: #{tpu_custom_call.1} parent=1 // pred_fallthru
      _
    %305 = vsyncpa [#allocation4], 1

</llo_original>
